<compile_context>
chip_gen: v7x
topology: tpu7x:2x2x1
jax: 0.10.0
libtpu: 0.0.40
codegen_flags: <defaults>
</compile_context>

<pallas_src>
import jax
import jax.numpy as jnp
from jax.experimental import pallas as pl
from jax.experimental.pallas import tpu as pltpu


def conv1x1_sub_kernel(w_ref, x_ref, o_ref):
    # w_ref: SMEM (C,)          -- conv weights as scalars
    # x_ref: VMEM (C, R, 128)   -- channels-major, lane-dense spatial slab
    # o_ref: VMEM (R, 128)      -- dense output slab
    C = x_ref.shape[0]
    # C-term weighted sum on the VPU (K=5 would waste the MXU), tree-reduced
    # to cut the serial dependency chain; -11.0 folded into the last leaf.
    terms = [x_ref[c] * w_ref[c] for c in range(C)]
    terms[-1] = terms[-1] - 11.0
    while len(terms) > 1:
        nxt = [terms[i] + terms[i + 1] for i in range(0, len(terms) - 1, 2)]
        if len(terms) % 2:
            nxt.append(terms[-1])
        terms = nxt
    o_ref[...] = terms[0].astype(o_ref.dtype)


@jax.jit
def conv1x1_minus11(x_nchw, weight_oihw):
    """x_nchw: (N, C, H, W) float32; weight_oihw: (1, C, 1, 1) float32."""
    N, C, H, W = x_nchw.shape
    total = N * H * W
    assert total % 128 == 0, "N*H*W must be a multiple of 128"
    R = total // 128  # e.g. 32 rows of 128 lanes for (1, 5, 64, 64)

    # Channels-major slab; batch + spatial folded into the row axis so a
    # single kernel launch covers any N (amortizes dispatch overhead).
    x_slab = jnp.transpose(x_nchw, (1, 0, 2, 3)).reshape(C, R, 128)
    w = weight_oihw.reshape(C).astype(jnp.float32)  # (C,) scalars -> SMEM

    out_slab = pl.pallas_call(
        conv1x1_sub_kernel,
        out_shape=jax.ShapeDtypeStruct((R, 128), jnp.float32),
        in_specs=[
            pl.BlockSpec(memory_space=pltpu.MemorySpace.SMEM),  # weights
            pl.BlockSpec(memory_space=pltpu.MemorySpace.VMEM),  # x slab
        ],
        out_specs=pl.BlockSpec(memory_space=pltpu.MemorySpace.VMEM),
    )(w, x_slab)

    return out_slab.reshape(N, 1, H, W)


if __name__ == "__main__":
    key = jax.random.PRNGKey(0)
    kx, kw = jax.random.split(key)

    # Input matching the module's expected input: (1, 5, 64, 64)
    x = jax.random.normal(kx, (1, 5, 64, 64), dtype=jnp.float32)
    # Deterministic conv weight, shape (out=1, in=5, 1, 1); bias=False in spec
    weight = jax.random.normal(kw, (1, 5, 1, 1), dtype=jnp.float32)

    out = conv1x1_minus11(x, weight)
    out = jax.block_until_ready(out)

    # Reference in plain JAX: 1x1 conv == channel-weighted sum, then -11.0
    ref = jnp.einsum("nchw,oc->nohw", x, weight.reshape(1, 5)) - 11.0
    assert out.shape == (1, 1, 64, 64)
    assert jnp.allclose(out, ref, atol=1e-5, rtol=1e-5)

    print("KERNEL_OK")
</pallas_src>

<mosaic_0001>
module attributes {stable_mosaic.version = 11 : i64} {
  func.func @conv1x1_sub_kernel(%arg0: memref<5xf32, #tpu.memory_space<smem>>, %arg1: memref<5x32x128xf32, #tpu.memory_space<vmem>>, %arg2: memref<32x128xf32, #tpu.memory_space<vmem>>) attributes {dimension_semantics = [], scalar_prefetch = 0 : i64, scratch_operands = 0 : i64, tpu.core_type = #tpu.core_type<tc>} {
    %c0 = arith.constant 0 : index
    %c0_0 = arith.constant 0 : index
    %c0_1 = arith.constant 0 : index
    %0 = vector.load %arg1[%c0, %c0_0, %c0_1] : memref<5x32x128xf32, #tpu.memory_space<vmem>>, vector<1x32x128xf32>
    %1 = vector.shape_cast %0 : vector<1x32x128xf32> to vector<32x128xf32>
    %c0_2 = arith.constant 0 : index
    %2 = memref.load %arg0[%c0_2] : memref<5xf32, #tpu.memory_space<smem>>
    %3 = vector.broadcast %2 : f32 to vector<32x128xf32>
    %4 = arith.mulf %1, %3 : vector<32x128xf32>
    %c1 = arith.constant 1 : index
    %c0_3 = arith.constant 0 : index
    %c0_4 = arith.constant 0 : index
    %5 = vector.load %arg1[%c1, %c0_3, %c0_4] : memref<5x32x128xf32, #tpu.memory_space<vmem>>, vector<1x32x128xf32>
    %6 = vector.shape_cast %5 : vector<1x32x128xf32> to vector<32x128xf32>
    %c1_5 = arith.constant 1 : index
    %7 = memref.load %arg0[%c1_5] : memref<5xf32, #tpu.memory_space<smem>>
    %8 = vector.broadcast %7 : f32 to vector<32x128xf32>
    %9 = arith.mulf %6, %8 : vector<32x128xf32>
    %c2 = arith.constant 2 : index
    %c0_6 = arith.constant 0 : index
    %c0_7 = arith.constant 0 : index
    %10 = vector.load %arg1[%c2, %c0_6, %c0_7] : memref<5x32x128xf32, #tpu.memory_space<vmem>>, vector<1x32x128xf32>
    %11 = vector.shape_cast %10 : vector<1x32x128xf32> to vector<32x128xf32>
    %c2_8 = arith.constant 2 : index
    %12 = memref.load %arg0[%c2_8] : memref<5xf32, #tpu.memory_space<smem>>
    %13 = vector.broadcast %12 : f32 to vector<32x128xf32>
    %14 = arith.mulf %11, %13 : vector<32x128xf32>
    %c3 = arith.constant 3 : index
    %c0_9 = arith.constant 0 : index
    %c0_10 = arith.constant 0 : index
    %15 = vector.load %arg1[%c3, %c0_9, %c0_10] : memref<5x32x128xf32, #tpu.memory_space<vmem>>, vector<1x32x128xf32>
    %16 = vector.shape_cast %15 : vector<1x32x128xf32> to vector<32x128xf32>
    %c3_11 = arith.constant 3 : index
    %17 = memref.load %arg0[%c3_11] : memref<5xf32, #tpu.memory_space<smem>>
    %18 = vector.broadcast %17 : f32 to vector<32x128xf32>
    %19 = arith.mulf %16, %18 : vector<32x128xf32>
    %c4 = arith.constant 4 : index
    %c0_12 = arith.constant 0 : index
    %c0_13 = arith.constant 0 : index
    %20 = vector.load %arg1[%c4, %c0_12, %c0_13] : memref<5x32x128xf32, #tpu.memory_space<vmem>>, vector<1x32x128xf32>
    %21 = vector.shape_cast %20 : vector<1x32x128xf32> to vector<32x128xf32>
    %c4_14 = arith.constant 4 : index
    %22 = memref.load %arg0[%c4_14] : memref<5xf32, #tpu.memory_space<smem>>
    %23 = vector.broadcast %22 : f32 to vector<32x128xf32>
    %24 = arith.mulf %21, %23 : vector<32x128xf32>
    %cst = arith.constant 1.100000e+01 : f32
    %25 = vector.broadcast %cst : f32 to vector<32x128xf32>
    %26 = arith.subf %24, %25 : vector<32x128xf32>
    %27 = arith.addf %4, %9 : vector<32x128xf32>
    %28 = arith.addf %14, %19 : vector<32x128xf32>
    %29 = arith.addf %27, %28 : vector<32x128xf32>
    %30 = arith.addf %29, %26 : vector<32x128xf32>
    %c0_15 = arith.constant 0 : index
    %c0_16 = arith.constant 0 : index
    %31 = vector.load %arg2[%c0_15, %c0_16] : memref<32x128xf32, #tpu.memory_space<vmem>>, vector<32x128xf32>
    tpu.vector_store %arg2[%c0_15, %c0_16], %30 {strides = array<i32>} : memref<32x128xf32, #tpu.memory_space<vmem>>, vector<32x128xf32>,
    return
  }
}

</mosaic_0001>

<llo_original>
// kernel: conv1x1_minus11.1
$region0: #{conv1x1_minus11.1}
  #allocation0 [shape = 'u32[]', space=smem, size = 0x4, offset = 0x4, fixed_abs, tag = 'smem constant byte address 0x4 - core index']
  #allocation1 [shape = 'u32[144,128]{1,0:T(1,128)}', space=vmem, size = 0x12000, scoped, tag = 'internal scratch']
  %s0 = inlined_call_operand.vmem [shape: f32[5], index: 0, kind: input, shape index: {}]
  %s1 = inlined_call_operand.vmem [shape: f32[5,32,128], index: 1, kind: input, shape index: {}]
  %s2 = inlined_call_operand.vmem [shape: f32[32,128], index: 2, kind: output, shape index: {}]
  %s3 = sld [smem:[#allocation0]]
  $region22: #{conv1x1_minus11.1} parent=0
    _
  %s5 = ssub.s32 1, %s3
  %s6 = scalar_select 0, %s5, %s3
  $region1: #{conv1x1_minus11.1} parent=0
    #allocation2 [shape = 'u8[512]{0}', space=smem, size = 0x200, scoped, tag = 'input window, operand 0, single buffered']
    #allocation3 [shape = 's32[1]{0}', space=sflag, size = 0x4, scoped, tag = 'scoped memory for conv1x1_minus11.1']
    %7 = vsyncpa [#allocation3], 0
    // Predicated region
    $region2: #{conv1x1_minus11.1} parent=1 // pred_check
      _
    $region3: #{conv1x1_minus11.1} parent=1 // pred_check_branch
      %9 = sbr.rel (0) target = $region5
    $region4: #{conv1x1_minus11.1} parent=1 // pred_region
      %s11 = ssub.s32 16, 16
      %12 = vsyncadd [#allocation3], %s11
      %s14 = sshll.u32 %s0, 4
      %s15 = int_to_ptr.vmem [resolvable:$true] %s14
      %17 = dma.vmem_to_smem %s15, 16, [#allocation2], [#allocation3]
    $region5: #{conv1x1_minus11.1} parent=1 // pred_fallthru
      _
    // Predicated region
    $region6: #{conv1x1_minus11.1} parent=1 // pred_check
      _
    $region7: #{conv1x1_minus11.1} parent=1 // pred_check_branch
      %19 = sbr.rel (0) target = $region9
    $region8: #{conv1x1_minus11.1} parent=1 // pred_region
      _
    $region9: #{conv1x1_minus11.1} parent=1 // pred_fallthru
      _
    // Predicated region
    $region10: #{conv1x1_minus11.1} parent=1 // pred_check
      _
    $region11: #{conv1x1_minus11.1} parent=1 // pred_check_branch
      %21 = sbr.rel (0) target = $region13
    $region12: #{conv1x1_minus11.1} parent=1 // pred_region
      %22 = dma.done [#allocation3], 16
    $region13: #{conv1x1_minus11.1} parent=1 // pred_fallthru
      _
    %23 = sfence
    %v24 = vld [vmem:[%s1] sm:$0xff]
    %v25 = vld [vmem:[%s1 + $0x8] sm:$0xff]
    %v26 = vld [vmem:[%s1 + $0x10] sm:$0xff]
    %v27 = vld [vmem:[%s1 + $0x18] sm:$0xff]
    %s28 = sld [smem:[#allocation2]]
    %v29 = vstv %s28
    %v30 = vmul.f32 %v24, %v29
    %v31 = vmul.f32 %v25, %v29
    %v32 = vmul.f32 %v26, %v29
    %v33 = vmul.f32 %v27, %v29
    %s34 = scalar_lea.vmem %s1, 32
    %v35 = vld [vmem:[%s34] sm:$0xff]
    %v36 = vld [vmem:[%s34 + $0x8] sm:$0xff]
    %v37 = vld [vmem:[%s34 + $0x10] sm:$0xff]
    %v38 = vld [vmem:[%s34 + $0x18] sm:$0xff]
    %s39 = sld [smem:[#allocation2 + $0x1]]
    %v40 = vstv %s39
    %v41 = vmul.f32 %v35, %v40
    %v42 = vmul.f32 %v36, %v40
    %v43 = vmul.f32 %v37, %v40
    %v44 = vmul.f32 %v38, %v40
    %s45 = scalar_lea.vmem %s1, 64
    %v46 = vld [vmem:[%s45] sm:$0xff]
    %v47 = vld [vmem:[%s45 + $0x8] sm:$0xff]
    %v48 = vld [vmem:[%s45 + $0x10] sm:$0xff]
    %v49 = vld [vmem:[%s45 + $0x18] sm:$0xff]
    %s50 = sld [smem:[#allocation2 + $0x2]]
    %v51 = vstv %s50
    %v52 = vmul.f32 %v46, %v51
    %v53 = vmul.f32 %v47, %v51
    %v54 = vmul.f32 %v48, %v51
    %v55 = vmul.f32 %v49, %v51
    %s56 = scalar_lea.vmem %s1, 96
    %v57 = vld [vmem:[%s56] sm:$0xff]
    %v58 = vld [vmem:[%s56 + $0x8] sm:$0xff]
    %v59 = vld [vmem:[%s56 + $0x10] sm:$0xff]
    %v60 = vld [vmem:[%s56 + $0x18] sm:$0xff]
    %s61 = sld [smem:[#allocation2 + $0x3]]
    %v62 = vstv %s61
    %v63 = vmul.f32 %v57, %v62
    %v64 = vmul.f32 %v58, %v62
    %v65 = vmul.f32 %v59, %v62
    %v66 = vmul.f32 %v60, %v62
    %s67 = scalar_lea.vmem %s1, 128
    %v68 = vld [vmem:[%s67] sm:$0xff]
    %v69 = vld [vmem:[%s67 + $0x8] sm:$0xff]
    %v70 = vld [vmem:[%s67 + $0x10] sm:$0xff]
    %v71 = vld [vmem:[%s67 + $0x18] sm:$0xff]
    %s72 = sld [smem:[#allocation2 + $0x4]]
    %v73 = vstv %s72
    %v74 = vmul.f32 %v68, %v73
    %v75 = vmul.f32 %v69, %v73
    %v76 = vmul.f32 %v70, %v73
    %v77 = vmul.f32 %v71, %v73
    %v78 = vsub.f32 %v74, 11.0
    %v79 = vsub.f32 %v75, 11.0
    %v80 = vsub.f32 %v76, 11.0
    %v81 = vsub.f32 %v77, 11.0
    %v82 = vadd.f32 %v30, %v41
    %v83 = vadd.f32 %v31, %v42
    %v84 = vadd.f32 %v32, %v43
    %v85 = vadd.f32 %v33, %v44
    %v86 = vadd.f32 %v52, %v63
    %v87 = vadd.f32 %v53, %v64
    %v88 = vadd.f32 %v54, %v65
    %v89 = vadd.f32 %v55, %v66
    %v90 = vadd.f32 %v82, %v86
    %v91 = vadd.f32 %v83, %v87
    %v92 = vadd.f32 %v84, %v88
    %v93 = vadd.f32 %v85, %v89
    %v94 = vadd.f32 %v90, %v78
    %v95 = vadd.f32 %v91, %v79
    %v96 = vadd.f32 %v92, %v80
    %v97 = vadd.f32 %v93, %v81
    %98 = vst [vmem:[%s2] sm:$0xff] %v94
    %99 = vst [vmem:[%s2 + $0x8] sm:$0xff] %v95
    %100 = vst [vmem:[%s2 + $0x10] sm:$0xff] %v96
    %101 = vst [vmem:[%s2 + $0x18] sm:$0xff] %v97
    // Predicated region
    $region14: #{conv1x1_minus11.1} parent=1 // pred_check
      _
    $region15: #{conv1x1_minus11.1} parent=1 // pred_check_branch
      %103 = sbr.rel (0) target = $region17
    $region16: #{conv1x1_minus11.1} parent=1 // pred_region
      _
    $region17: #{conv1x1_minus11.1} parent=1 // pred_fallthru
      _
    // Predicated region
    $region18: #{conv1x1_minus11.1} parent=1 // pred_check
      _
    $region19: #{conv1x1_minus11.1} parent=1 // pred_check_branch
      %105 = sbr.rel (0) target = $region21
    $region20: #{conv1x1_minus11.1} parent=1 // pred_region
      _
    $region21: #{conv1x1_minus11.1} parent=1 // pred_fallthru
      _
    %106 = vsyncpa [#allocation3], 1

</llo_original>
